<compile_context>
chip_gen: v7x
topology: tpu7x:2x2x1
jax: 0.10.0
libtpu: 0.0.40
codegen_flags: <defaults>
</compile_context>

<pallas_src>
import functools

import jax
import jax.numpy as jnp
from jax import lax
from jax.experimental import pallas as pl
from jax.experimental.pallas import tpu as pltpu

TAU = 0.2
EPS = 1e-8  # per-vector norm clamp (torch clamps the *product* of norms; see note)


# --------------------------------------------------------------------------- #
# Pre-pass: row-wise L2 normalize (+ optional scale), cast to bf16.
# --------------------------------------------------------------------------- #
def _normalize_kernel(v_ref, out_ref, *, scale):
    v = v_ref[...].astype(jnp.float32)
    # 1 / max(||v||, eps) == rsqrt(max(sum(v^2), eps^2))  -> EUP, no divide.
    inv = lax.rsqrt(jnp.maximum(jnp.sum(v * v, axis=-1, keepdims=True), EPS * EPS))
    out_ref[...] = (v * (inv * scale)).astype(out_ref.dtype)


def _normalize_rows(v, *, scale, block):
    N, D = v.shape
    return pl.pallas_call(
        functools.partial(_normalize_kernel, scale=scale),
        out_shape=jax.ShapeDtypeStruct((N, D), jnp.bfloat16),
        grid_spec=pltpu.PrefetchScalarGridSpec(
            num_scalar_prefetch=0,
            grid=(N // block,),
            in_specs=[pl.BlockSpec((block, D), lambda i: (i, 0))],
            out_specs=pl.BlockSpec((block, D), lambda i: (i, 0)),
        ),
        compiler_params=pltpu.CompilerParams(dimension_semantics=("parallel",)),
    )(v)


# --------------------------------------------------------------------------- #
# Main kernel: streamed LSE over column blocks of the logits matrix.
# --------------------------------------------------------------------------- #
def _contrastive_kernel(xs_ref, yh_ref, out_ref, sumexp_acc, diag_acc, *, shift):
    kj = pl.program_id(1)

    @pl.when(kj == 0)
    def _():
        sumexp_acc[...] = jnp.zeros_like(sumexp_acc)
        diag_acc[...] = jnp.zeros_like(diag_acc)

    # Logits tile on the MXU: bf16 operands (x already carries 1/tau),
    # f32 accumulation. Contract the lane-major last dims -> no transpose.
    sim = lax.dot_general(
        xs_ref[...],
        yh_ref[...],
        dimension_numbers=(((1,), (1,)), ((), ())),
        preferred_element_type=jnp.float32,
    )  # (TM, TN) == x[i]·y[j] / tau

    if shift:
        sumexp_acc[...] += jnp.sum(jnp.exp(sim - shift), axis=1, keepdims=True)
    else:
        sumexp_acc[...] += jnp.sum(jnp.exp(sim), axis=1, keepdims=True)

    # Diagonal logits from the same MXU tile (consistent precision with the
    # denominator); only the aligned block contributes, once per row block.
    @pl.when(kj == pl.program_id(0))
    def _():
        tm, tn = sim.shape
        rows = lax.broadcasted_iota(jnp.int32, (tm, tn), 0)
        cols = lax.broadcasted_iota(jnp.int32, (tm, tn), 1)
        diag_acc[...] = jnp.sum(
            jnp.where(rows == cols, sim, 0.0), axis=1, keepdims=True
        )

    @pl.when(kj == pl.num_programs(1) - 1)
    def _():
        lse = jnp.log(sumexp_acc[...])
        if shift:
            lse = lse + shift
        out_ref[...] = lse - diag_acc[...]   # -log p_ii per row


def _pick_block(D):
    # bf16 x/y tiles double-buffered (~8*block*D B) + f32 sim/exp temporaries
    # (~8*block^2 B) kept under a conservative budget that fits v5e/v6e scoped
    # defaults and v7x's 64 MiB physical VMEM with headroom.
    budget = 24 << 20
    block = 512
    while block > 128 and (8 * block * D + 8 * block * block) > budget:
        block //= 2
    return block


def contrastive_loss(x, y, *, tau=TAU, block=None):
    """x, y: (N, D) arrays. Returns scalar f32 loss."""
    assert x.shape == y.shape and x.ndim == 2
    N, D = x.shape
    inv_tau = 1.0 / float(tau)

    if block is None:
        block = min(N, _pick_block(D))
    # TODO(synk): no ragged-tail handling; N must be padded to a block multiple
    # upstream, and very large D would want a K-tiling of the contraction.
    assert N % block == 0, "N must be divisible by the row/column block size"
    grid_blocks = N // block

    # Pre-normalize once (outside the (qi, kj) grid), fold 1/tau into x.
    xs = _normalize_rows(x, scale=inv_tau, block=block)   # bf16, rows * (1/tau)
    yh = _normalize_rows(y, scale=1.0, block=block)       # bf16, unit rows

    # Logits <= 1/tau (|cos| <= 1): only shift when exp(1/tau) risks f32 overflow.
    shift = inv_tau if inv_tau > 30.0 else 0.0

    vmem_bytes = (
        4 * block * D * 2        # bf16 x/y tiles, double-buffered
        + 2 * block * block * 4  # sim + exp f32 temporaries
        + 16 * block             # output block + f32 scratch rows
    )
    vmem_limit = int(min(max(2 * vmem_bytes, 16 << 20), 48 << 20))

    cost = pl.CostEstimate(
        flops=2 * N * N * D,
        transcendentals=N * N,
        bytes_accessed=int(N * D * 2 * (1 + grid_blocks) + 4 * N),
    )

    per_row = pl.pallas_call(
        functools.partial(_contrastive_kernel, shift=shift),
        out_shape=jax.ShapeDtypeStruct((N, 1), jnp.float32),
        grid_spec=pltpu.PrefetchScalarGridSpec(
            num_scalar_prefetch=0,
            grid=(grid_blocks, grid_blocks),
            in_specs=[
                pl.BlockSpec((block, D), lambda qi, kj: (qi, 0)),  # x row block
                pl.BlockSpec((block, D), lambda qi, kj: (kj, 0)),  # y col block
            ],
            out_specs=pl.BlockSpec((block, 1), lambda qi, kj: (qi, 0)),
            scratch_shapes=[
                pltpu.VMEM((block, 1), jnp.float32),  # running sum of exp
                pltpu.VMEM((block, 1), jnp.float32),  # diagonal logits
            ],
        ),
        compiler_params=pltpu.CompilerParams(
            dimension_semantics=("parallel", "arbitrary"),
            vmem_limit_bytes=vmem_limit,
        ),
        cost_estimate=cost,
    )(xs, yh)

    return jnp.mean(per_row)


def _reference_loss(x, y, tau=TAU):
    # Pure-JAX f32 reference mirroring the PyTorch forward.
    # TODO(synk): torch F.cosine_similarity clamps the *product* of the norms
    # by eps; here each norm is clamped separately (differs only for ~zero vectors).
    x = x.astype(jnp.float32)
    y = y.astype(jnp.float32)
    xh = x / jnp.maximum(jnp.linalg.norm(x, axis=-1, keepdims=True), EPS)
    yh = y / jnp.maximum(jnp.linalg.norm(y, axis=-1, keepdims=True), EPS)
    sim = xh @ yh.T
    logsm = jax.nn.log_softmax(sim / tau, axis=1)
    return -jnp.mean(jnp.diag(logsm))


if __name__ == "__main__":
    # Small shapes: batch N=32 samples, hidden D=128 features.
    # block=8 -> a 4x4 grid, exercising the streamed-LSE / accumulator path.
    N, D = 32, 128
    key = jax.random.PRNGKey(0)
    kx, ky = jax.random.split(key)
    x = jax.random.normal(kx, (N, D), dtype=jnp.float32)
    y = jax.random.normal(ky, (N, D), dtype=jnp.float32)

    loss = jax.block_until_ready(contrastive_loss(x, y, block=8))
    ref = jax.block_until_ready(_reference_loss(x, y))

    # bf16 MXU operands -> ~1e-3 level difference vs the f32 reference.
    assert jnp.allclose(loss, ref, atol=1e-2, rtol=1e-2), (loss, ref)
    print("KERNEL_OK")
</pallas_src>

<mosaic_0001>
module attributes {stable_mosaic.version = 11 : i64} {
  func.func @_normalize_kernel(%arg0: i32, %arg1: memref<8x128xf32, #tpu.memory_space<vmem>>, %arg2: memref<8x128xbf16, #tpu.memory_space<vmem>>) attributes {dimension_semantics = [#tpu.dimension_semantics<parallel>], iteration_bounds = array<i64: 4>, scalar_prefetch = 0 : i64, scratch_operands = 0 : i64, tpu.core_type = #tpu.core_type<tc>, window_params = [{transform_indices = @transform_0, window_bounds = array<i64: 8, 128>}, {transform_indices = @transform_1, window_bounds = array<i64: 8, 128>}]} {
    %c0 = arith.constant 0 : index
    %c0_0 = arith.constant 0 : index
    %0 = vector.load %arg1[%c0, %c0_0] : memref<8x128xf32, #tpu.memory_space<vmem>>, vector<8x128xf32>
    %1 = arith.mulf %0, %0 : vector<8x128xf32>
    %cst = arith.constant dense<0.000000e+00> : vector<8xf32>
    %2 = vector.multi_reduction <add>, %1, %cst [1] : vector<8x128xf32> to vector<8xf32>
    %3 = vector.shape_cast %2 : vector<8xf32> to vector<8x1xf32>
    %cst_1 = arith.constant 1.000000e-16 : f32
    %4 = vector.broadcast %cst_1 : f32 to vector<8x1xf32>
    %5 = arith.maximumf %3, %4 : vector<8x1xf32>
    %6 = math.rsqrt %5 : vector<8x1xf32>
    %cst_2 = arith.constant 5.000000e+00 : f32
    %7 = vector.broadcast %cst_2 : f32 to vector<8x1xf32>
    %8 = arith.mulf %6, %7 : vector<8x1xf32>
    %9 = vector.broadcast %8 : vector<8x1xf32> to vector<8x128xf32>
    %10 = arith.mulf %0, %9 : vector<8x128xf32>
    %11 = arith.truncf %10 : vector<8x128xf32> to vector<8x128xbf16>
    %c0_3 = arith.constant 0 : index
    %c0_4 = arith.constant 0 : index
    %12 = vector.load %arg2[%c0_3, %c0_4] : memref<8x128xbf16, #tpu.memory_space<vmem>>, vector<8x128xbf16>
    tpu.vector_store %arg2[%c0_3, %c0_4], %11 {strides = array<i32>} : memref<8x128xbf16, #tpu.memory_space<vmem>>, vector<8x128xbf16>,
    return
  }
  func.func @transform_0(%arg0: i32) -> (i32, i32) {
    %c0_i32 = arith.constant 0 : i32
    %c0_i32_0 = arith.constant 0 : i32
    return %arg0, %c0_i32 : i32, i32
  }
  func.func @transform_1(%arg0: i32) -> (i32, i32) {
    %c0_i32 = arith.constant 0 : i32
    %c0_i32_0 = arith.constant 0 : i32
    return %arg0, %c0_i32 : i32, i32
  }
}

</mosaic_0001>

<llo_original>
// kernel: tpu_custom_call.1
$region0: #{tpu_custom_call.1}
  #allocation0 [shape = 'u32[]', space=smem, size = 0x4, offset = 0x4, fixed_abs, tag = 'smem constant byte address 0x4 - core index']
  #allocation1 [shape = 'u32[144,128]{1,0:T(1,128)}', space=vmem, size = 0x12000, scoped, tag = 'internal scratch']
  %s0 = inlined_call_operand.hbm [shape: f32[32,128], index: 0, kind: input, shape index: {}]
  %s1 = inlined_call_operand.hbm [shape: bf16[32,128], index: 1, kind: output, shape index: {}]
  %s2 = sld [smem:[#allocation0]]
  $region41: #{tpu_custom_call.1} parent=0
    _
  %s4 = ssub.s32 1, %s2
  %s5 = scalar_select 0, %s4, %s2
  $region1: #{tpu_custom_call.1} parent=0
    #allocation2 [shape = 'u8[8192]{0}', space=vmem, size = 0x2000, scoped, tag = 'input window, operand 0']
    #allocation3 [shape = 's32[2]{0}', space=sflag, size = 0x8, scoped, tag = 'scoped memory for tpu_custom_call.1']
    #allocation4 [shape = 's32[2]{0}', space=sflag, size = 0x8, scoped, tag = 'scoped memory for tpu_custom_call.1']
    #allocation5 [shape = 'u8[4096]{0}', space=vmem, size = 0x1000, scoped, tag = 'output window, operand 0']
    %6 = vsyncpa [#allocation3], 0
    %s7 = scalar_lea.sflag [#allocation3], 1
    %8 = vsyncpa %s7, 0
    %9 = vsyncpa [#allocation4], 0
    %s10 = scalar_lea.sflag [#allocation4], 1
    %11 = vsyncpa %s10, 0
    loop: start=0, step=1, limit=6
    $region2: #{tpu_custom_call.1} parent=1 // loop_pre_header
      _
    $region3: #{tpu_custom_call.1} parent=1 // loop_header
      %s13 = sphi 0, %s17
      %p14 = scmp.ge.s32.totalorder %s13, 6
      %s23 = sphi 0, %s25
      %s26 = sphi 0, %s23
      %s27 = sphi 0, %s26
      %s43 = sphi 0, %s27
      %s49 = sphi 0, %s51
      %s52 = sphi 0, %s49
      %s53 = sphi 0, %s52
      %s69 = sphi 0, %s53
    $region4: #{tpu_custom_call.1} parent=1 // loop_header_branch
      %16 = sbr.rel (%p14) target = $region8
    $region5: #{tpu_custom_call.1} parent=1 // loop_body
      %s18 = ssub.s32 %s13, 1
      %s19 = ssub.s32 %s13, 2
      %s20 = sadd.s32 %s13, 1
      %s21 = ssub.s32 %s13, %s20
      %p22 = scmp.eq.s32.totalorder %s21, 0
      %s24 = sadd.s32 %s23, 1
      %s25 = scalar_select %p22, %s23, %s24
      %p28 = pneg %p22
      %p29 = scmp.eq.s32.totalorder %s13, 3
      %p30 = por %p28, %p29
      %p31 = scmp.ne.s32.totalorder %s23, %s26
      %p32 = scmp.eq.s32.totalorder %s13, 0
      %p33 = por %p31, %p32
      %p34 = scmp.ne.s32.totalorder %s23, %s26
      %p35 = scmp.eq.s32.totalorder %s18, 3
      %p36 = por %p34, %p35
      %p37 = scmp.ne.s32.totalorder %s26, %s27
      %p38 = scmp.eq.s32.totalorder %s18, 0
      %p39 = por %p37, %p38
      %p40 = scmp.ne.s32.totalorder %s26, %s27
      %p41 = scmp.eq.s32.totalorder %s19, 3
      %p42 = por %p40, %p41
      %p44 = scmp.ne.s32.totalorder %s27, %s43
      %p45 = scmp.eq.s32.totalorder %s19, 0
      %p46 = por %p44, %p45
      %s47 = ssub.s32 %s13, %s20
      %p48 = scmp.eq.s32.totalorder %s47, 0
      %s50 = sadd.s32 %s49, 1
      %s51 = scalar_select %p48, %s49, %s50
      %p54 = pneg %p48
      %p55 = scmp.eq.s32.totalorder %s13, 3
      %p56 = por %p54, %p55
      %p57 = scmp.ne.s32.totalorder %s49, %s52
      %p58 = scmp.eq.s32.totalorder %s13, 0
      %p59 = por %p57, %p58
      %p60 = scmp.ne.s32.totalorder %s49, %s52
      %p61 = scmp.eq.s32.totalorder %s18, 3
      %p62 = por %p60, %p61
      %p63 = scmp.ne.s32.totalorder %s52, %s53
      %p64 = scmp.eq.s32.totalorder %s18, 0
      %p65 = por %p63, %p64
      %p66 = scmp.ne.s32.totalorder %s52, %s53
      %p67 = scmp.eq.s32.totalorder %s19, 3
      %p68 = por %p66, %p67
      %p70 = scmp.ne.s32.totalorder %s53, %s69
      %p71 = scmp.eq.s32.totalorder %s19, 0
      %p72 = por %p70, %p71
      %p73 = scmp.le.s32.totalorder 1, %s13
      %p74 = scmp.lt.s32.totalorder %s13, 5
      %p75 = pnand %p73, %p74
      %p76 = pneg %p75
      // Predicated region
      $region9: #{tpu_custom_call.1} parent=5 // pred_check
        _
      $region10: #{tpu_custom_call.1} parent=5 // pred_check_branch
        %78 = sbr.rel (%p75) target = $region12
      $region11: #{tpu_custom_call.1} parent=5 // pred_region
        %s79 = ssub.s32 %s13, 1
      $region12: #{tpu_custom_call.1} parent=5 // pred_fallthru
        _
      %p80 = scmp.lt.s32.totalorder %s13, 4
      // Predicated region
      $region13: #{tpu_custom_call.1} parent=5 // pred_check
        %p81 = pneg %p80
      $region14: #{tpu_custom_call.1} parent=5 // pred_check_branch
        %83 = sbr.rel (%p81) target = $region16
      $region15: #{tpu_custom_call.1} parent=5 // pred_region
        // Predicated region
        $region17: #{tpu_custom_call.1} parent=15 // pred_check
          %p84 = pneg %p33
        $region18: #{tpu_custom_call.1} parent=15 // pred_check_branch
          %86 = sbr.rel (%p84) target = $region20
        $region19: #{tpu_custom_call.1} parent=15 // pred_region
          %s87 = sand.u32 %s23, 1
          %s88 = scalar_lea.sflag [#allocation3], %s87
          %s89 = sand.u32 %s23, 1
          %s90 = smul.addr %s89, 8
          %s91 = scalar_lea.vmem [#allocation2], %s90
          %s93 = ssub.s32 128, 128
          %94 = vsyncadd %s88, %s93
          %s95 = smul.addr %s13, 128
          %s96 = scalar_lea.hbm %s0, %s95
          %s98 = sshll.u32 %s91, 4
          %s99 = int_to_ptr.vmem [resolvable:$true] %s98
          %101 = dma.hbm_to_vmem [thread:$0]  %s96, 128, %s99, %s88
        $region20: #{tpu_custom_call.1} parent=15 // pred_fallthru
          _
      $region16: #{tpu_custom_call.1} parent=5 // pred_fallthru
        _
      %p102 = scmp.le.s32.totalorder 1, %s13
      %p103 = scmp.lt.s32.totalorder %s13, 5
      %p104 = pnand %p102, %p103
      %p105 = pneg %p104
      // Predicated region
      $region21: #{tpu_custom_call.1} parent=5 // pred_check
        _
      $region22: #{tpu_custom_call.1} parent=5 // pred_check_branch
        %107 = sbr.rel (%p104) target = $region24
      $region23: #{tpu_custom_call.1} parent=5 // pred_region
        %s108 = ssub.s32 %s13, 1
        %s109 = sand.u32 %s26, 1
        %s110 = scalar_lea.sflag [#allocation3], %s109
        %s111 = sand.u32 %s26, 1
        %s112 = smul.addr %s111, 8
        %s113 = scalar_lea.vmem [#allocation2], %s112
        // Predicated region
        $region25: #{tpu_custom_call.1} parent=23 // pred_check
          %p114 = pneg %p39
        $region26: #{tpu_custom_call.1} parent=23 // pred_check_branch
          %116 = sbr.rel (%p114) target = $region28
        $region27: #{tpu_custom_call.1} parent=23 // pred_region
          %117 = dma.done %s110, 128
        $region28: #{tpu_custom_call.1} parent=23 // pred_fallthru
          _
        %s118 = sand.u32 %s26, 1
        %s119 = scalar_lea.sflag [#allocation3], %s118
        %s120 = sand.u32 %s26, 1
        %s121 = smul.addr %s120, 8
        %s122 = scalar_lea.vmem [#allocation2], %s121
        %p123 = pneg %p39
        %p124 = pneg %p36
        %p125 = pneg %p65
        %p126 = pneg %p62
        %s127 = sand.u32 %s52, 1
        %s128 = scalar_lea.sflag [#allocation4], %s127
        %s129 = sand.u32 %s52, 1
        %s130 = smul.addr %s129, 4
        %s131 = scalar_lea.vmem [#allocation5], %s130
        %v132 = vld [vmem:[%s113] sm:$0xff]
        %v133 = vmul.f32 %v132, %v132
        %134 = vadd.xlane.f32.xlu0 %v133
        %v135 = vpop.xlane.xlu0 %134
        %v136 = vmax.f32 %v135, 1e-16
        %v137 = vrsqrt.pop %v136
        %v138 = vmul.f32 %v137, 5.0
        %v139 = vmul.f32 %v132, %v138
        %v140 = vpack.c.bf16 %v139, %v139
        %141 = vst [vmem:[%s131] sm:$0xf] %v140
        %s142 = sand.u32 %s52, 1
        %s143 = scalar_lea.sflag [#allocation4], %s142
        %s144 = sand.u32 %s52, 1
        %s145 = smul.addr %s144, 4
        %s146 = scalar_lea.vmem [#allocation5], %s145
        // Predicated region
        $region29: #{tpu_custom_call.1} parent=23 // pred_check
          %p147 = pneg %p62
        $region30: #{tpu_custom_call.1} parent=23 // pred_check_branch
          %149 = sbr.rel (%p147) target = $region32
        $region31: #{tpu_custom_call.1} parent=23 // pred_region
          %s151 = ssub.s32 64, 64
          %152 = vsyncadd %s143, %s151
          %s153 = smul.addr %s18, 64
          %s154 = scalar_lea.hbm %s1, %s153
          %s156 = sshll.u32 %s146, 4
          %s157 = int_to_ptr.vmem [resolvable:$true] %s156
          %159 = dma.vmem_to_hbm [thread:$0]  %s157, 64, %s154, %s143
        $region32: #{tpu_custom_call.1} parent=23 // pred_fallthru
          _
      $region24: #{tpu_custom_call.1} parent=5 // pred_fallthru
        _
      %p160 = scmp.le.s32.totalorder 2, %s13
      // Predicated region
      $region33: #{tpu_custom_call.1} parent=5 // pred_check
        %p161 = pneg %p160
      $region34: #{tpu_custom_call.1} parent=5 // pred_check_branch
        %163 = sbr.rel (%p161) target = $region36
      $region35: #{tpu_custom_call.1} parent=5 // pred_region
        %s164 = ssub.s32 %s13, 2
        // Predicated region
        $region37: #{tpu_custom_call.1} parent=35 // pred_check
          %p165 = pneg %p68
        $region38: #{tpu_custom_call.1} parent=35 // pred_check_branch
          %167 = sbr.rel (%p165) target = $region40
        $region39: #{tpu_custom_call.1} parent=35 // pred_region
          %s168 = sand.u32 %s53, 1
          %s169 = scalar_lea.sflag [#allocation4], %s168
          %s170 = sand.u32 %s53, 1
          %s171 = smul.addr %s170, 4
          %s172 = scalar_lea.vmem [#allocation5], %s171
          %173 = dma.done %s169, 64
        $region40: #{tpu_custom_call.1} parent=35 // pred_fallthru
          _
      $region36: #{tpu_custom_call.1} parent=5 // pred_fallthru
        _
    $region6: #{tpu_custom_call.1} parent=1 // loop_footer
      %s17 = sadd.s32 1, %s13
    $region7: #{tpu_custom_call.1} parent=1 // loop_footer_branch
      %12 = sbr.rel target = $region3
    $region8: #{tpu_custom_call.1} parent=1 // loop_exit
      _
    %174 = vsyncpa [#allocation3], 1
    %s175 = scalar_lea.sflag [#allocation3], 1
    %176 = vsyncpa %s175, 1
    %177 = vsyncpa [#allocation4], 1
    %s178 = scalar_lea.sflag [#allocation4], 1
    %179 = vsyncpa %s178, 1

</llo_original>
